<compile_context>
chip_gen: v5e
topology: v5e:2x2
jax: 0.10.0
libtpu: 0.0.40
codegen_flags: <defaults>
</compile_context>

<pallas_src>
import functools

import jax
import jax.numpy as jnp
from jax.experimental import pallas as pl
from jax.experimental.pallas import tpu as pltpu


# ------------------------------- Pallas kernel -----------------------------------

def _cnn_affine_kernel(xe_ref, xd_ref, w_ref, o_ref):
    """out = xe @ A_en + xd @ A_de + bias  (columns >= P*J of the slab are zero).

    xe_ref: (B, Fe)    flattened encoder input (raw row-major .view flatten)
    xd_ref: (B, Fd)    flattened decoder input
    w_ref : (Rpad, L)  packed slab: rows [0, Fe) = A_en, [Fe, Fe+Fd) = A_de,
                       row Fe+Fd = composed bias, remaining rows/cols zero-pad.
    o_ref : (B, L)     lane-dense output (L = 128); real data in cols [0, P*J).
    """
    fe = xe_ref.shape[1]
    fd = xd_ref.shape[1]
    # Static, sublane-aligned slices of the single weight slab (free ref views).
    acc = jnp.dot(xe_ref[...], w_ref[0:fe, :], preferred_element_type=jnp.float32)
    acc = acc + jnp.dot(xd_ref[...], w_ref[fe:fe + fd, :],
                        preferred_element_type=jnp.float32)
    o_ref[...] = (acc + w_ref[fe + fd:fe + fd + 1, :]).astype(o_ref.dtype)


# ---------------------------- params (PyTorch layout) -----------------------------

def init_params(key, input_size, output_size, out_channel, kernel,
                n_layers, seq_len, seq_pred_len, de_seq_len):
    """PyTorch-layout parameters (raw, un-packed)."""
    ks = jax.random.split(key, 6 + 2 * n_layers)
    p = {}
    p["conv_w"] = [0.1 * jax.random.normal(ks[i], (out_channel, input_size, kernel),
                                           jnp.float32) for i in range(n_layers)]
    p["conv_b"] = [0.1 * jax.random.normal(ks[n_layers + i], (out_channel,),
                                           jnp.float32) for i in range(n_layers)]
    k0 = 2 * n_layers
    p["lin_w"] = 0.1 * jax.random.normal(ks[k0 + 0], (output_size, out_channel), jnp.float32)
    p["lin_b"] = 0.1 * jax.random.normal(ks[k0 + 1], (output_size,), jnp.float32)
    p["proj_w"] = 0.1 * jax.random.normal(ks[k0 + 2], (input_size, out_channel), jnp.float32)
    p["proj_b"] = 0.1 * jax.random.normal(ks[k0 + 3], (input_size,), jnp.float32)
    p["proj_out_w"] = 0.1 * jax.random.normal(ks[k0 + 4], (seq_pred_len, seq_len), jnp.float32)
    p["proj_out_b"] = 0.1 * jax.random.normal(ks[k0 + 5], (seq_pred_len,), jnp.float32)
    # proj2 is created inside forward() in the reference (fresh random each call);
    # here we initialise it once, deterministically.
    k2a, k2b = jax.random.split(jax.random.fold_in(key, 1234))
    p["proj2_w"] = 0.1 * jax.random.normal(k2a, (de_seq_len, seq_len + de_seq_len), jnp.float32)
    p["proj2_b"] = 0.1 * jax.random.normal(k2b, (de_seq_len,), jnp.float32)
    return p


# --------------------------- pure-JAX reference forward ---------------------------

def _ref_forward(params, x_en, x_de, *, kernel, n_layers, out_channel):
    """Exact JAX transcription of the PyTorch forward (dropout = identity)."""
    def ref_conv(x, w, bias):
        K = w.shape[2]
        T_out = x.shape[2] - K + 1
        acc = jnp.zeros((x.shape[0], w.shape[0], T_out), jnp.float32)
        for k in range(K):
            acc = acc + jnp.einsum("oc,bct->bot", w[:, :, k], x[:, :, k:k + T_out])
        return acc + bias[None, :, None]

    def ref_lin(x, w, b):
        return jnp.einsum("bmn,on->bmo", x, w) + b

    bsz, seq_len, f = x_en.shape
    de_seq_len = x_de.shape[1]
    x_en = jnp.reshape(x_en, (bsz, f, seq_len))      # .contiguous().view: raw reshape
    x_de = jnp.reshape(x_de, (bsz, f, de_seq_len))
    pad = kernel - 1
    x_en = jnp.pad(x_en, ((0, 0), (0, 0), (pad, 0)))
    x_de = jnp.pad(x_de, ((0, 0), (0, 0), (pad, 0)))
    for i in range(n_layers):                        # loop overwrites -> last layer survives
        x_en_out = ref_conv(x_en, params["conv_w"][i], params["conv_b"][i])
    x_en_out = ref_lin(jnp.transpose(x_en_out, (0, 2, 1)), params["proj_w"], params["proj_b"])
    x_en_out = jnp.transpose(x_en_out, (0, 2, 1))
    x_de = jnp.concatenate([x_en_out, x_de], axis=2)
    for i in range(n_layers):
        x_de_out = ref_conv(x_de, params["conv_w"][i], params["conv_b"][i])
    x_de_out = ref_lin(x_de_out, params["proj2_w"], params["proj2_b"])
    x_de_out = ref_lin(x_de_out, params["proj_out_w"], params["proj_out_b"])
    flat = jnp.reshape(x_de_out, (bsz, -1, out_channel))
    return ref_lin(flat, params["lin_w"], params["lin_b"])


# ------------------------------ offline weight fold -------------------------------

def pack_params(params, *, kernel, n_layers, seq_len, de_seq_len, seq_pred_len,
                lanes=128):
    """Fold the entire (affine) forward into one padded weight slab (done once).

    Valid because the reference forward has no nonlinearity and dropout is identity.
    Returns slab of shape (round_up(Fe+Fd+1, 8), lanes) with:
        rows [0, Fe)       -> A_en   (Fe = seq_len * input_size)
        rows [Fe, Fe+Fd)   -> A_de   (Fd = de_seq_len * input_size)
        row  Fe+Fd         -> composed bias
        everything else    -> 0      (keeps the kernel's extra output lanes exactly 0)
    """
    assert de_seq_len == seq_len, \
        "proj_out(seq_len -> seq_pred_len) requires de_seq_len == seq_len"
    output_size, out_channel = params["lin_w"].shape
    input_size = params["proj_w"].shape[0]
    fe = seq_len * input_size
    fd = de_seq_len * input_size
    pj = seq_pred_len * output_size
    assert pj <= lanes

    def single_fwd(xe_flat, xd_flat):
        xe = xe_flat.reshape(1, seq_len, input_size)
        xd = xd_flat.reshape(1, de_seq_len, input_size)
        out = _ref_forward(params, xe, xd, kernel=kernel, n_layers=n_layers,
                           out_channel=out_channel)
        return out.reshape(pj)

    ze = jnp.zeros((fe,), jnp.float32)
    zd = jnp.zeros((fd,), jnp.float32)
    bias = single_fwd(ze, zd)                                          # (pj,)
    # Forward is affine -> jacfwd yields the exact linear coefficients.
    j_en, j_de = jax.jacfwd(single_fwd, argnums=(0, 1))(ze, zd)        # (pj,fe),(pj,fd)

    rows = fe + fd + 1
    rows_pad = ((rows + 7) // 8) * 8
    slab = jnp.zeros((rows_pad, lanes), jnp.float32)
    slab = slab.at[0:fe, 0:pj].set(j_en.T)
    slab = slab.at[fe:fe + fd, 0:pj].set(j_de.T)
    slab = slab.at[fe + fd, 0:pj].set(bias)
    return slab


# ---------------------------------- CNN forward -----------------------------------

@functools.partial(jax.jit, static_argnames=("seq_pred_len", "output_size"))
def cnn_forward(slab, x_en, x_de, *, seq_pred_len, output_size):
    b = x_en.shape[0]
    # The reference's .contiguous().view(b, f, L) is a raw row-major reshape; the
    # composed A_en/A_de were built against the same raw flatten, so flattening
    # (b, L, f) -> (b, L*f) here is exact and free (bitcast, no transpose).
    xe = jnp.reshape(x_en, (b, -1)).astype(jnp.float32)
    xd = jnp.reshape(x_de, (b, -1)).astype(jnp.float32)

    out = pl.pallas_call(
        _cnn_affine_kernel,
        out_shape=jax.ShapeDtypeStruct((b, slab.shape[1]), jnp.float32),
        in_specs=[pl.BlockSpec(memory_space=pltpu.MemorySpace.VMEM)] * 3,
        out_specs=pl.BlockSpec(memory_space=pltpu.MemorySpace.VMEM),
    )(xe, xd, slab)

    pj = seq_pred_len * output_size
    # out columns [pj, 128) are exactly zero (zero slab columns); slice them away
    # and restore the reference's (b, seq_pred_len, output_size) view.
    return out[:, :pj].reshape(b, seq_pred_len, output_size)


# ------------------------------------- main ---------------------------------------

if __name__ == "__main__":
    # Hyperparameters (small, consistent with the module's forward):
    input_size, output_size = 4, 3
    out_channel, kernel_size, n_layers = 8, 3, 2
    seq_len, seq_pred_len = 8, 5
    de_seq_len = seq_len        # proj_out(seq_len -> seq_pred_len) requires this
    batch = 2
    d_r = 0.0                   # dropout = identity (deterministic forward)

    key = jax.random.PRNGKey(0)
    k_en, k_de, k_p = jax.random.split(key, 3)
    x_en = jax.random.normal(k_en, (batch, seq_len, input_size), jnp.float32)
    x_de = jax.random.normal(k_de, (batch, de_seq_len, input_size), jnp.float32)

    params = init_params(k_p, input_size, output_size, out_channel, kernel_size,
                         n_layers, seq_len, seq_pred_len, de_seq_len)
    slab = pack_params(params, kernel=kernel_size, n_layers=n_layers,
                       seq_len=seq_len, de_seq_len=de_seq_len,
                       seq_pred_len=seq_pred_len)

    out = cnn_forward(slab, x_en, x_de,
                      seq_pred_len=seq_pred_len, output_size=output_size)
    out = jax.block_until_ready(out)

    ref = _ref_forward(params, x_en, x_de,
                       kernel=kernel_size, n_layers=n_layers, out_channel=out_channel)
    assert out.shape == (batch, seq_pred_len, output_size), out.shape
    assert jnp.allclose(out, ref, atol=1e-4, rtol=1e-4), "mismatch vs reference"

    print("KERNEL_OK")
</pallas_src>

<mosaic_0001>
module attributes {stable_mosaic.version = 11 : i64} {
  func.func @_cnn_affine_kernel(%arg0: memref<2x32xf32, #tpu.memory_space<vmem>>, %arg1: memref<2x32xf32, #tpu.memory_space<vmem>>, %arg2: memref<72x128xf32, #tpu.memory_space<vmem>>, %arg3: memref<2x128xf32, #tpu.memory_space<vmem>>) attributes {dimension_semantics = [], scalar_prefetch = 0 : i64, scratch_operands = 0 : i64, tpu.core_type = #tpu.core_type<tc>} {
    %c0 = arith.constant 0 : index
    %c0_0 = arith.constant 0 : index
    %0 = vector.load %arg0[%c0, %c0_0] : memref<2x32xf32, #tpu.memory_space<vmem>>, vector<2x32xf32>
    %c0_1 = arith.constant 0 : index
    %c0_2 = arith.constant 0 : index
    %1 = vector.load %arg2[%c0_1, %c0_2] : memref<72x128xf32, #tpu.memory_space<vmem>>, vector<32x128xf32>
    %cst = arith.constant dense<0.000000e+00> : vector<2x128xf32>
    %2 = tpu.matmul %0, %1, %cst {dimension_numbers = #tpu.dot_dimension_numbers<[1], [0], [0], [1], [0, 0, 1, 1], [], []>} : vector<2x32xf32>, vector<32x128xf32>, vector<2x128xf32> -> vector<2x128xf32>
    %c0_3 = arith.constant 0 : index
    %c0_4 = arith.constant 0 : index
    %3 = vector.load %arg1[%c0_3, %c0_4] : memref<2x32xf32, #tpu.memory_space<vmem>>, vector<2x32xf32>
    %c32 = arith.constant 32 : index
    %c0_5 = arith.constant 0 : index
    %4 = vector.load %arg2[%c32, %c0_5] : memref<72x128xf32, #tpu.memory_space<vmem>>, vector<32x128xf32>
    %cst_6 = arith.constant dense<0.000000e+00> : vector<2x128xf32>
    %5 = tpu.matmul %3, %4, %cst_6 {dimension_numbers = #tpu.dot_dimension_numbers<[1], [0], [0], [1], [0, 0, 1, 1], [], []>} : vector<2x32xf32>, vector<32x128xf32>, vector<2x128xf32> -> vector<2x128xf32>
    %6 = arith.addf %2, %5 : vector<2x128xf32>
    %c64 = arith.constant 64 : index
    %c0_7 = arith.constant 0 : index
    %7 = vector.load %arg2[%c64, %c0_7] : memref<72x128xf32, #tpu.memory_space<vmem>>, vector<1x128xf32>
    %8 = vector.broadcast %7 : vector<1x128xf32> to vector<2x128xf32>
    %9 = arith.addf %6, %8 : vector<2x128xf32>
    %c0_8 = arith.constant 0 : index
    %c0_9 = arith.constant 0 : index
    %10 = vector.load %arg3[%c0_8, %c0_9] : memref<2x128xf32, #tpu.memory_space<vmem>>, vector<2x128xf32>
    tpu.vector_store %arg3[%c0_8, %c0_9], %9 {strides = array<i32>} : memref<2x128xf32, #tpu.memory_space<vmem>>, vector<2x128xf32>,
    return
  }
}

</mosaic_0001>

<llo_original>
// kernel: cnn_forward.1
$region0: #{cnn_forward.1}
  #allocation0 [shape = 'u32[]', space=smem, size = 0x4, offset = 0x4, fixed_abs, tag = 'smem constant byte address 0x4 - core index']
  #allocation1 [shape = 'u32[72,128]{1,0:T(1,128)}', space=vmem, size = 0x9000, scoped, tag = 'internal scratch']
  %s0 = inlined_call_operand.vmem [shape: f32[2,32], index: 0, kind: input, shape index: {}]
  %s1 = inlined_call_operand.vmem [shape: f32[2,32], index: 1, kind: input, shape index: {}]
  %s2 = inlined_call_operand.hbm [shape: f32[72,128], index: 2, kind: input, shape index: {}]
  %s3 = inlined_call_operand.vmem [shape: f32[2,128], index: 3, kind: output, shape index: {}]
  %s4 = sld [smem:[#allocation0]]
  $region26: #{cnn_forward.1} parent=0
    _
  %s6 = ssub.s32 1, %s4
  %s7 = scalar_select 0, %s6, %s4
  $region1: #{cnn_forward.1} parent=0
    #allocation2 [shape = 'u8[36864]{0}', space=vmem, size = 0x9000, scoped, tag = 'input window, operand 2, single buffered']
    #allocation3 [shape = 's32[1]{0}', space=sflag, size = 0x4, scoped, tag = 'scoped memory for cnn_forward.1']
    %8 = vsyncpa [#allocation3], 0
    // Predicated region
    $region2: #{cnn_forward.1} parent=1 // pred_check
      _
    $region3: #{cnn_forward.1} parent=1 // pred_check_branch
      %10 = sbr.rel (0) target = $region5
    $region4: #{cnn_forward.1} parent=1 // pred_region
      _
    $region5: #{cnn_forward.1} parent=1 // pred_fallthru
      _
    // Predicated region
    $region6: #{cnn_forward.1} parent=1 // pred_check
      _
    $region7: #{cnn_forward.1} parent=1 // pred_check_branch
      %12 = sbr.rel (0) target = $region9
    $region8: #{cnn_forward.1} parent=1 // pred_region
      _
    $region9: #{cnn_forward.1} parent=1 // pred_fallthru
      _
    // Predicated region
    $region10: #{cnn_forward.1} parent=1 // pred_check
      _
    $region11: #{cnn_forward.1} parent=1 // pred_check_branch
      %14 = sbr.rel (0) target = $region13
    $region12: #{cnn_forward.1} parent=1 // pred_region
      %16 = vsyncadd [#allocation3], 0
      %s17 = sshll.u32 %s2, 4
      %s18 = int_to_ptr.hbm [resolvable:$true] %s17
      %s19 = sshll.u32 [#allocation2], 4
      %s20 = int_to_ptr.vmem [resolvable:$true] %s19
      %25 = dma.hbm_to_vmem [thread:$0]  %s18, 1152, %s20, [#allocation3], 128, 128, 8
    $region13: #{cnn_forward.1} parent=1 // pred_fallthru
      _
    // Predicated region
    $region14: #{cnn_forward.1} parent=1 // pred_check
      _
    $region15: #{cnn_forward.1} parent=1 // pred_check_branch
      %27 = sbr.rel (0) target = $region17
    $region16: #{cnn_forward.1} parent=1 // pred_region
      %29 = dma.done [#allocation3], 1152
    $region17: #{cnn_forward.1} parent=1 // pred_fallthru
      _
    %v30 = vld [vmem:[%s0] sm:$0x3]
    %v31 = vld [vmem:[#allocation2] sm:$0xff]
    %v32 = vld [vmem:[#allocation2 + $0x8] sm:$0xff]
    %v33 = vld [vmem:[#allocation2 + $0x10] sm:$0xff]
    %v34 = vld [vmem:[#allocation2 + $0x18] sm:$0xff]
    %v35 = vld [vmem:[%s1] sm:$0x3]
    %v36 = vld [vmem:[#allocation2 + $0x20] sm:$0xff]
    %v37 = vld [vmem:[#allocation2 + $0x28] sm:$0xff]
    %v38 = vld [vmem:[#allocation2 + $0x30] sm:$0xff]
    %v39 = vld [vmem:[#allocation2 + $0x38] sm:$0xff]
    %vm40 = vcmask 261120
    %v42 = vsel %vm40, %v35, 0
    %44 = vmatpush.msra.mxu0 0.0
    %45 = vmatpush.msra.mxu0 0.0
    %46 = vmatpush.msra.mxu0 0.0
    %47 = vmatpush.msra.mxu0 0.0
    %48 = vmatpush.msra.mxu0 0.0
    %49 = vmatpush.msra.mxu0 0.0
    %50 = vmatpush.msra.mxu0 0.0
    %51 = vmatpush.msra.mxu0 0.0
    %52 = vmatpush.msra.mxu0 0.0
    %53 = vmatpush.msra.mxu0 0.0
    %54 = vmatpush.msra.mxu0 0.0
    %55 = vmatpush.msra.mxu0 0.0
    %56 = vmatpush.msra.mxu0 %v39
    %57 = vmatpush.msra.mxu0 %v38
    %58 = vmatpush.msra.mxu0 %v37
    %59 = vmatpush.msra.mxu0 %v36
    %60 = vmatmul.f32.gmra.mxu0 %v42
    %v61 = vpop.f32.mrf.mxu0
    %v62 = vadd.f32 0.0, %v61
    %63 = vdwg.mxu0
    %v65 = vsel %vm40, %v30, 0
    %67 = vmatpush.msra.mxu0 0.0
    %68 = vmatpush.msra.mxu0 0.0
    %69 = vmatpush.msra.mxu0 0.0
    %70 = vmatpush.msra.mxu0 0.0
    %71 = vmatpush.msra.mxu0 0.0
    %72 = vmatpush.msra.mxu0 0.0
    %73 = vmatpush.msra.mxu0 0.0
    %74 = vmatpush.msra.mxu0 0.0
    %75 = vmatpush.msra.mxu0 0.0
    %76 = vmatpush.msra.mxu0 0.0
    %77 = vmatpush.msra.mxu0 0.0
    %78 = vmatpush.msra.mxu0 0.0
    %79 = vmatpush.msra.mxu0 %v34
    %80 = vmatpush.msra.mxu0 %v33
    %81 = vmatpush.msra.mxu0 %v32
    %82 = vmatpush.msra.mxu0 %v31
    %83 = vmatmul.f32.gmra.mxu0 %v65
    %v84 = vpop.f32.mrf.mxu0
    %v85 = vadd.f32 %v62, %v84
    %86 = vdwg.mxu0
    %v87 = vld [vmem:[#allocation2 + $0x40] sm:$0x1]
    %v88 = vperm.slane %v87, 0
    %v89 = vadd.f32 %v85, %v88
    %90 = vst [vmem:[%s3] sm:$0x3] %v89
    // Predicated region
    $region18: #{cnn_forward.1} parent=1 // pred_check
      _
    $region19: #{cnn_forward.1} parent=1 // pred_check_branch
      %92 = sbr.rel (0) target = $region21
    $region20: #{cnn_forward.1} parent=1 // pred_region
      _
    $region21: #{cnn_forward.1} parent=1 // pred_fallthru
      _
    // Predicated region
    $region22: #{cnn_forward.1} parent=1 // pred_check
      _
    $region23: #{cnn_forward.1} parent=1 // pred_check_branch
      %94 = sbr.rel (0) target = $region25
    $region24: #{cnn_forward.1} parent=1 // pred_region
      _
    $region25: #{cnn_forward.1} parent=1 // pred_fallthru
      _
    %95 = vsyncpa [#allocation3], 1

</llo_original>
